<compile_context>
chip_gen: v7x
topology: tpu7x:2x2x1
jax: 0.10.0
libtpu: 0.0.40
codegen_flags: <defaults>
</compile_context>

<pallas_src>
import functools

import jax
import jax.numpy as jnp
import numpy as np
from jax import lax
from jax.experimental import pallas as pl
from jax.experimental.pallas import tpu as pltpu

EPS = 1e-5


# ---------------------------- fused Pallas kernel ----------------------------

def _down_fused_kernel(x_ref, w1_ref, s1_ref, b1_ref, w2_ref, s2_ref, b2_ref,
                       o_ref, *, hp, wp, cin, cmid, cout, compute_dtype):
    """Per-sample block: 2x2 maxpool -> conv3x3+BN+ReLU -> conv3x3+BN+ReLU.

    x_ref : (1, hp, 2, wp, 2*cin)  2x2 pooling window packed onto the lane axis
    w*_ref: (9*c_in, c_out)        conv weights flattened for a single K=9*c_in matmul
    s*_ref, b*_ref: (1, c_out)     folded BN scale / (conv-bias + BN) shift, f32
    o_ref : (1, hp*wp, cout)
    """
    # ---- 2x2 max pool (VPU only; lane slices, no strided access) ----
    x = x_ref[0]                                              # (hp, 2, wp, 2*cin)
    hmax = jnp.maximum(x[:, 0], x[:, 1])                      # (hp, wp, 2*cin)
    pooled = jnp.maximum(hmax[..., :cin], hmax[..., cin:])    # (hp, wp, cin)

    def conv3x3_bn_relu(t, w_ref, s_ref, b_ref, c):
        # reflect pad (pad=1): row/col 1 and -2, same as padding_mode='reflect'
        pw = jnp.concatenate([t[:, 1:2], t, t[:, wp - 2:wp - 1]], axis=1)   # (hp, wp+2, c)
        pp = jnp.concatenate([pw[1:2], pw, pw[hp - 2:hp - 1]], axis=0)      # (hp+2, wp+2, c)
        # im2col entirely in VMEM; tap order (dy*3 + dx)*c + ch matches w.reshape(9c, co)
        row = jnp.concatenate([pp[:, 0:wp], pp[:, 1:wp + 1], pp[:, 2:wp + 2]],
                              axis=-1)                                      # (hp+2, wp, 3c)
        pat = jnp.concatenate([row[0:hp], row[1:hp + 1], row[2:hp + 2]],
                              axis=-1)                                      # (hp, wp, 9c)
        pat = pat.reshape(hp * wp, 9 * c)                                   # minor dim kept
        # single K=9*c MXU matmul with f32 accumulation
        acc = jnp.dot(pat, w_ref[...], preferred_element_type=jnp.float32)  # (hp*wp, co)
        acc = acc * s_ref[...] + b_ref[...]        # folded conv bias + BN (eval mode)
        return jnp.maximum(acc, 0.0)               # ReLU, f32

    y1 = conv3x3_bn_relu(pooled, w1_ref, s1_ref, b1_ref, cin)      # (hp*wp, cmid) f32
    y1 = y1.reshape(hp, wp, cmid).astype(compute_dtype)            # stays in VMEM
    y2 = conv3x3_bn_relu(y1, w2_ref, s2_ref, b2_ref, cmid)         # (hp*wp, cout) f32
    o_ref[0] = y2.astype(o_ref.dtype)


# ---------------------------- wrappers ----------------------------

def _fold_bn(w_hwio, bias, gamma, beta, mean, var, compute_dtype):
    """Fold conv bias + eval-mode BN into per-channel scale/shift; flatten weights."""
    cin, cout = w_hwio.shape[2], w_hwio.shape[3]
    scale = gamma / jnp.sqrt(var + EPS)
    shift = (bias - mean) * scale + beta
    return (w_hwio.reshape(9 * cin, cout).astype(compute_dtype),
            scale.reshape(1, cout).astype(jnp.float32),
            shift.reshape(1, cout).astype(jnp.float32))


def down_forward_nhwc(x_nhwc, params, *, compute_dtype=jnp.float32):
    """maxpool(2) + DoubleConv on an NHWC activation; returns NHWC."""
    N, H, W, Cin = x_nhwc.shape
    He, We = (H // 2) * 2, (W // 2) * 2            # MaxPool2d(2) floors odd extents
    Hp, Wp = He // 2, We // 2
    if Hp < 2 or Wp < 2:
        raise ValueError("reflect padding requires pooled spatial dims >= 2")

    w1f, s1, b1 = _fold_bn(*params["conv1"], compute_dtype)
    w2f, s2, b2 = _fold_bn(*params["conv2"], compute_dtype)
    Cmid, Cout = w1f.shape[1], w2f.shape[1]

    # Free (metadata-only) regroup: each 2x2 pooling window lands on the lane axis.
    x5 = x_nhwc[:, :He, :We, :].reshape(N, Hp, 2, Wp, 2 * Cin).astype(compute_dtype)

    kernel = functools.partial(_down_fused_kernel, hp=Hp, wp=Wp, cin=Cin,
                               cmid=Cmid, cout=Cout, compute_dtype=compute_dtype)

    def _full(a):  # small parameter arrays: whole array resident every grid step
        nd = a.ndim
        return pl.BlockSpec(a.shape, lambda n: (0,) * nd)

    y = pl.pallas_call(
        kernel,
        out_shape=jax.ShapeDtypeStruct((N, Hp * Wp, Cout), x_nhwc.dtype),
        grid=(N,),                                  # one pipelined block per sample
        in_specs=[
            pl.BlockSpec((1, Hp, 2, Wp, 2 * Cin), lambda n: (n, 0, 0, 0, 0)),
            _full(w1f), _full(s1), _full(b1),
            _full(w2f), _full(s2), _full(b2),
        ],
        out_specs=pl.BlockSpec((1, Hp * Wp, Cout), lambda n: (n, 0, 0)),
        compiler_params=pltpu.CompilerParams(
            dimension_semantics=("parallel",),      # shards batch across v7x's 2 TCs
            vmem_limit_bytes=48 * 1024 * 1024),     # explicit; fits v7x 64 MiB VMEM
    )(x5, w1f, s1, b1, w2f, s2, b2)

    return y.reshape(N, Hp, Wp, Cout)               # free row-major reshape


def down_forward(x_nchw, params, *, compute_dtype=jnp.float32):
    """Down.forward: NCHW in, (NCHW, None) out — matches the PyTorch module.

    NOTE: inside a channels-last model prefer down_forward_nhwc to avoid the two
    boundary transposes (each is a full HBM pass done by XLA outside the kernel).
    """
    x = jnp.transpose(x_nchw, (0, 2, 3, 1))         # NCHW -> NHWC
    y = down_forward_nhwc(x, params, compute_dtype=compute_dtype)
    y = jnp.transpose(y, (0, 3, 1, 2))              # NHWC -> NCHW
    # TODO(synk): Dropout2d(p=0.0) in eval mode is the identity; no kernel needed.
    return y, None                                   # use_pooling_indices=False


# ---------------------------- params ----------------------------

def init_params(key, cin, cout):
    cmid = cout  # DoubleConv: mid_channels defaults to out_channels
    k1, k2 = jax.random.split(key, 2)

    def conv_params(k, ci, co):
        kw, kb, kg, kbt, km, kv = jax.random.split(k, 6)
        bound = 1.0 / np.sqrt(ci * 9)
        w = jax.random.uniform(kw, (3, 3, ci, co), jnp.float32, -bound, bound)
        b = jax.random.uniform(kb, (co,), jnp.float32, -bound, bound)
        gamma = 1.0 + 0.1 * jax.random.normal(kg, (co,), jnp.float32)
        beta = 0.1 * jax.random.normal(kbt, (co,), jnp.float32)
        mean = 0.1 * jax.random.normal(km, (co,), jnp.float32)
        var = jnp.abs(1.0 + 0.1 * jax.random.normal(kv, (co,), jnp.float32))
        return (w, b, gamma, beta, mean, var)

    return {"conv1": conv_params(k1, cin, cmid),
            "conv2": conv_params(k2, cmid, cout)}


# ---------------------------- pure-JAX reference ----------------------------

def _ref_conv_bn_relu(x, w, b, g, bt, m, v):
    xp = jnp.pad(x, ((0, 0), (1, 1), (1, 1), (0, 0)), mode="reflect")
    y = lax.conv_general_dilated(xp, w, (1, 1), "VALID",
                                 dimension_numbers=("NHWC", "HWIO", "NHWC"))
    y = y + b
    y = (y - m) / jnp.sqrt(v + EPS) * g + bt
    return jnp.maximum(y, 0.0)


def ref_down(x_nchw, params):
    x = jnp.transpose(x_nchw, (0, 2, 3, 1))
    y = lax.reduce_window(x, -jnp.inf, lax.max, (1, 2, 2, 1), (1, 2, 2, 1), "VALID")
    y = _ref_conv_bn_relu(y, *params["conv1"])
    y = _ref_conv_bn_relu(y, *params["conv2"])
    return jnp.transpose(y, (0, 3, 1, 2))


# ---------------------------- main ----------------------------

if __name__ == "__main__":
    key = jax.random.PRNGKey(0)
    kx, kp = jax.random.split(key)
    N, Cin, Cout, H, W = 2, 4, 8, 16, 16
    x = jax.random.normal(kx, (N, Cin, H, W), jnp.float32)
    params = init_params(kp, Cin, Cout)

    # f32 compute path (tight numerical check)
    y, idx = down_forward(x, params)
    y = jax.block_until_ready(y)
    assert idx is None
    assert y.shape == (N, Cout, H // 2, W // 2)

    y_ref = jax.block_until_ready(ref_down(x, params))
    np.testing.assert_allclose(np.asarray(y), np.asarray(y_ref),
                               rtol=1e-4, atol=1e-5)

    # bf16 MXU-input path (f32 accumulation) — loose tolerance vs f32 reference
    y_bf16, _ = down_forward(x, params, compute_dtype=jnp.bfloat16)
    y_bf16 = jax.block_until_ready(y_bf16)
    np.testing.assert_allclose(np.asarray(y_bf16), np.asarray(y_ref),
                               rtol=5e-2, atol=5e-2)

    print("KERNEL_OK")
</pallas_src>

<mosaic_0001>
module attributes {stable_mosaic.version = 11 : i64} {
  func.func @_down_fused_kernel(%arg0: i32, %arg1: memref<1x8x2x8x8xf32, #tpu.memory_space<vmem>>, %arg2: memref<36x8xf32, #tpu.memory_space<vmem>>, %arg3: memref<1x8xf32, #tpu.memory_space<vmem>>, %arg4: memref<1x8xf32, #tpu.memory_space<vmem>>, %arg5: memref<72x8xf32, #tpu.memory_space<vmem>>, %arg6: memref<1x8xf32, #tpu.memory_space<vmem>>, %arg7: memref<1x8xf32, #tpu.memory_space<vmem>>, %arg8: memref<1x64x8xf32, #tpu.memory_space<vmem>>) attributes {dimension_semantics = [#tpu.dimension_semantics<parallel>], iteration_bounds = array<i64: 2>, scalar_prefetch = 0 : i64, scratch_operands = 0 : i64, tpu.core_type = #tpu.core_type<tc>, window_params = [{transform_indices = @transform_0, window_bounds = array<i64: 1, 8, 2, 8, 8>}, {pipeline_mode = #tpu.pipeline_mode<synchronous>, transform_indices = @transform_1, window_bounds = array<i64: 36, 8>}, {pipeline_mode = #tpu.pipeline_mode<synchronous>, transform_indices = @transform_2, window_bounds = array<i64: 1, 8>}, {pipeline_mode = #tpu.pipeline_mode<synchronous>, transform_indices = @transform_3, window_bounds = array<i64: 1, 8>}, {pipeline_mode = #tpu.pipeline_mode<synchronous>, transform_indices = @transform_4, window_bounds = array<i64: 72, 8>}, {pipeline_mode = #tpu.pipeline_mode<synchronous>, transform_indices = @transform_5, window_bounds = array<i64: 1, 8>}, {pipeline_mode = #tpu.pipeline_mode<synchronous>, transform_indices = @transform_6, window_bounds = array<i64: 1, 8>}, {transform_indices = @transform_7, window_bounds = array<i64: 1, 64, 8>}]} {
    %c0 = arith.constant 0 : index
    %c0_0 = arith.constant 0 : index
    %c0_1 = arith.constant 0 : index
    %c0_2 = arith.constant 0 : index
    %c0_3 = arith.constant 0 : index
    %0 = vector.load %arg1[%c0, %c0_0, %c0_1, %c0_2, %c0_3] : memref<1x8x2x8x8xf32, #tpu.memory_space<vmem>>, vector<1x8x2x8x8xf32>
    %1 = vector.shape_cast %0 : vector<1x8x2x8x8xf32> to vector<8x2x8x8xf32>
    %2 = vector.extract_strided_slice %1 {offsets = [0, 0, 0, 0], sizes = [8, 1, 8, 8], strides = [1, 1, 1, 1]} : vector<8x2x8x8xf32> to vector<8x1x8x8xf32>
    %3 = vector.shape_cast %2 : vector<8x1x8x8xf32> to vector<8x8x8xf32>
    %4 = vector.extract_strided_slice %1 {offsets = [0, 1, 0, 0], sizes = [8, 1, 8, 8], strides = [1, 1, 1, 1]} : vector<8x2x8x8xf32> to vector<8x1x8x8xf32>
    %5 = vector.shape_cast %4 : vector<8x1x8x8xf32> to vector<8x8x8xf32>
    %6 = arith.maximumf %3, %5 : vector<8x8x8xf32>
    %7 = vector.extract_strided_slice %6 {offsets = [0, 0, 0], sizes = [8, 8, 4], strides = [1, 1, 1]} : vector<8x8x8xf32> to vector<8x8x4xf32>
    %8 = vector.extract_strided_slice %6 {offsets = [0, 0, 4], sizes = [8, 8, 4], strides = [1, 1, 1]} : vector<8x8x8xf32> to vector<8x8x4xf32>
    %9 = arith.maximumf %7, %8 : vector<8x8x4xf32>
    %10 = vector.extract_strided_slice %9 {offsets = [0, 1, 0], sizes = [8, 1, 4], strides = [1, 1, 1]} : vector<8x8x4xf32> to vector<8x1x4xf32>
    %11 = vector.extract_strided_slice %9 {offsets = [0, 6, 0], sizes = [8, 1, 4], strides = [1, 1, 1]} : vector<8x8x4xf32> to vector<8x1x4xf32>
    %12 = tpu.concatenate %10, %9, %11 in 1 : vector<8x1x4xf32>, vector<8x8x4xf32>, vector<8x1x4xf32> -> vector<8x10x4xf32>
    %13 = vector.extract_strided_slice %12 {offsets = [1, 0, 0], sizes = [1, 10, 4], strides = [1, 1, 1]} : vector<8x10x4xf32> to vector<1x10x4xf32>
    %14 = vector.extract_strided_slice %12 {offsets = [6, 0, 0], sizes = [1, 10, 4], strides = [1, 1, 1]} : vector<8x10x4xf32> to vector<1x10x4xf32>
    %15 = tpu.concatenate %13, %12, %14 in 0 : vector<1x10x4xf32>, vector<8x10x4xf32>, vector<1x10x4xf32> -> vector<10x10x4xf32>
    %16 = vector.extract_strided_slice %15 {offsets = [0, 0, 0], sizes = [10, 8, 4], strides = [1, 1, 1]} : vector<10x10x4xf32> to vector<10x8x4xf32>
    %17 = vector.extract_strided_slice %15 {offsets = [0, 1, 0], sizes = [10, 8, 4], strides = [1, 1, 1]} : vector<10x10x4xf32> to vector<10x8x4xf32>
    %18 = vector.extract_strided_slice %15 {offsets = [0, 2, 0], sizes = [10, 8, 4], strides = [1, 1, 1]} : vector<10x10x4xf32> to vector<10x8x4xf32>
    %19 = tpu.concatenate %16, %17, %18 in 2 : vector<10x8x4xf32>, vector<10x8x4xf32>, vector<10x8x4xf32> -> vector<10x8x12xf32>
    %20 = vector.extract_strided_slice %19 {offsets = [0, 0, 0], sizes = [8, 8, 12], strides = [1, 1, 1]} : vector<10x8x12xf32> to vector<8x8x12xf32>
    %21 = vector.extract_strided_slice %19 {offsets = [1, 0, 0], sizes = [8, 8, 12], strides = [1, 1, 1]} : vector<10x8x12xf32> to vector<8x8x12xf32>
    %22 = vector.extract_strided_slice %19 {offsets = [2, 0, 0], sizes = [8, 8, 12], strides = [1, 1, 1]} : vector<10x8x12xf32> to vector<8x8x12xf32>
    %23 = tpu.concatenate %20, %21, %22 in 2 : vector<8x8x12xf32>, vector<8x8x12xf32>, vector<8x8x12xf32> -> vector<8x8x36xf32>
    %24 = vector.shape_cast %23 : vector<8x8x36xf32> to vector<64x36xf32>
    %c0_4 = arith.constant 0 : index
    %c0_5 = arith.constant 0 : index
    %25 = vector.load %arg2[%c0_4, %c0_5] : memref<36x8xf32, #tpu.memory_space<vmem>>, vector<36x8xf32>
    %cst = arith.constant dense<0.000000e+00> : vector<64x8xf32>
    %26 = tpu.matmul %24, %25, %cst {dimension_numbers = #tpu.dot_dimension_numbers<[1], [0], [0], [1], [0, 0, 1, 1], [], []>} : vector<64x36xf32>, vector<36x8xf32>, vector<64x8xf32> -> vector<64x8xf32>
    %c0_6 = arith.constant 0 : index
    %c0_7 = arith.constant 0 : index
    %27 = vector.load %arg3[%c0_6, %c0_7] : memref<1x8xf32, #tpu.memory_space<vmem>>, vector<1x8xf32>
    %28 = vector.broadcast %27 : vector<1x8xf32> to vector<64x8xf32>
    %29 = arith.mulf %26, %28 : vector<64x8xf32>
    %c0_8 = arith.constant 0 : index
    %c0_9 = arith.constant 0 : index
    %30 = vector.load %arg4[%c0_8, %c0_9] : memref<1x8xf32, #tpu.memory_space<vmem>>, vector<1x8xf32>
    %31 = vector.broadcast %30 : vector<1x8xf32> to vector<64x8xf32>
    %32 = arith.addf %29, %31 : vector<64x8xf32>
    %cst_10 = arith.constant 0.000000e+00 : f32
    %33 = vector.broadcast %cst_10 : f32 to vector<64x8xf32>
    %34 = arith.maximumf %32, %33 : vector<64x8xf32>
    %35 = vector.shape_cast %34 : vector<64x8xf32> to vector<8x8x8xf32>
    %36 = vector.extract_strided_slice %35 {offsets = [0, 1, 0], sizes = [8, 1, 8], strides = [1, 1, 1]} : vector<8x8x8xf32> to vector<8x1x8xf32>
    %37 = vector.extract_strided_slice %35 {offsets = [0, 6, 0], sizes = [8, 1, 8], strides = [1, 1, 1]} : vector<8x8x8xf32> to vector<8x1x8xf32>
    %38 = tpu.concatenate %36, %35, %37 in 1 : vector<8x1x8xf32>, vector<8x8x8xf32>, vector<8x1x8xf32> -> vector<8x10x8xf32>
    %39 = vector.extract_strided_slice %38 {offsets = [1, 0, 0], sizes = [1, 10, 8], strides = [1, 1, 1]} : vector<8x10x8xf32> to vector<1x10x8xf32>
    %40 = vector.extract_strided_slice %38 {offsets = [6, 0, 0], sizes = [1, 10, 8], strides = [1, 1, 1]} : vector<8x10x8xf32> to vector<1x10x8xf32>
    %41 = tpu.concatenate %39, %38, %40 in 0 : vector<1x10x8xf32>, vector<8x10x8xf32>, vector<1x10x8xf32> -> vector<10x10x8xf32>
    %42 = vector.extract_strided_slice %41 {offsets = [0, 0, 0], sizes = [10, 8, 8], strides = [1, 1, 1]} : vector<10x10x8xf32> to vector<10x8x8xf32>
    %43 = vector.extract_strided_slice %41 {offsets = [0, 1, 0], sizes = [10, 8, 8], strides = [1, 1, 1]} : vector<10x10x8xf32> to vector<10x8x8xf32>
    %44 = vector.extract_strided_slice %41 {offsets = [0, 2, 0], sizes = [10, 8, 8], strides = [1, 1, 1]} : vector<10x10x8xf32> to vector<10x8x8xf32>
    %45 = tpu.concatenate %42, %43, %44 in 2 : vector<10x8x8xf32>, vector<10x8x8xf32>, vector<10x8x8xf32> -> vector<10x8x24xf32>
    %46 = vector.extract_strided_slice %45 {offsets = [0, 0, 0], sizes = [8, 8, 24], strides = [1, 1, 1]} : vector<10x8x24xf32> to vector<8x8x24xf32>
    %47 = vector.extract_strided_slice %45 {offsets = [1, 0, 0], sizes = [8, 8, 24], strides = [1, 1, 1]} : vector<10x8x24xf32> to vector<8x8x24xf32>
    %48 = vector.extract_strided_slice %45 {offsets = [2, 0, 0], sizes = [8, 8, 24], strides = [1, 1, 1]} : vector<10x8x24xf32> to vector<8x8x24xf32>
    %49 = tpu.concatenate %46, %47, %48 in 2 : vector<8x8x24xf32>, vector<8x8x24xf32>, vector<8x8x24xf32> -> vector<8x8x72xf32>
    %50 = vector.shape_cast %49 : vector<8x8x72xf32> to vector<64x72xf32>
    %c0_11 = arith.constant 0 : index
    %c0_12 = arith.constant 0 : index
    %51 = vector.load %arg5[%c0_11, %c0_12] : memref<72x8xf32, #tpu.memory_space<vmem>>, vector<72x8xf32>
    %cst_13 = arith.constant dense<0.000000e+00> : vector<64x8xf32>
    %52 = tpu.matmul %50, %51, %cst_13 {dimension_numbers = #tpu.dot_dimension_numbers<[1], [0], [0], [1], [0, 0, 1, 1], [], []>} : vector<64x72xf32>, vector<72x8xf32>, vector<64x8xf32> -> vector<64x8xf32>
    %c0_14 = arith.constant 0 : index
    %c0_15 = arith.constant 0 : index
    %53 = vector.load %arg6[%c0_14, %c0_15] : memref<1x8xf32, #tpu.memory_space<vmem>>, vector<1x8xf32>
    %54 = vector.broadcast %53 : vector<1x8xf32> to vector<64x8xf32>
    %55 = arith.mulf %52, %54 : vector<64x8xf32>
    %c0_16 = arith.constant 0 : index
    %c0_17 = arith.constant 0 : index
    %56 = vector.load %arg7[%c0_16, %c0_17] : memref<1x8xf32, #tpu.memory_space<vmem>>, vector<1x8xf32>
    %57 = vector.broadcast %56 : vector<1x8xf32> to vector<64x8xf32>
    %58 = arith.addf %55, %57 : vector<64x8xf32>
    %cst_18 = arith.constant 0.000000e+00 : f32
    %59 = vector.broadcast %cst_18 : f32 to vector<64x8xf32>
    %60 = arith.maximumf %58, %59 : vector<64x8xf32>
    %c0_19 = arith.constant 0 : index
    %c0_20 = arith.constant 0 : index
    %c0_21 = arith.constant 0 : index
    %61 = vector.load %arg8[%c0_19, %c0_20, %c0_21] : memref<1x64x8xf32, #tpu.memory_space<vmem>>, vector<1x64x8xf32>
    %62 = vector.shape_cast %61 : vector<1x64x8xf32> to vector<64x8xf32>
    %63 = vector.shape_cast %60 : vector<64x8xf32> to vector<1x64x8xf32>
    tpu.vector_store %arg8[%c0_19, %c0_20, %c0_21], %63 {strides = array<i32>} : memref<1x64x8xf32, #tpu.memory_space<vmem>>, vector<1x64x8xf32>,
    return
  }
  func.func @transform_0(%arg0: i32) -> (i32, i32, i32, i32, i32) {
    %c0_i32 = arith.constant 0 : i32
    %c0_i32_0 = arith.constant 0 : i32
    %c0_i32_1 = arith.constant 0 : i32
    %c0_i32_2 = arith.constant 0 : i32
    %c0_i32_3 = arith.constant 0 : i32
    return %arg0, %c0_i32, %c0_i32_0, %c0_i32_1, %c0_i32_2 : i32, i32, i32, i32, i32
  }
  func.func @transform_1(%arg0: i32) -> (i32, i32) {
    %c0_i32 = arith.constant 0 : i32
    %c0_i32_0 = arith.constant 0 : i32
    %c0_i32_1 = arith.constant 0 : i32
    return %c0_i32, %c0_i32_0 : i32, i32
  }
  func.func @transform_2(%arg0: i32) -> (i32, i32) {
    %c0_i32 = arith.constant 0 : i32
    %c0_i32_0 = arith.constant 0 : i32
    %c0_i32_1 = arith.constant 0 : i32
    return %c0_i32, %c0_i32_0 : i32, i32
  }
  func.func @transform_3(%arg0: i32) -> (i32, i32) {
    %c0_i32 = arith.constant 0 : i32
    %c0_i32_0 = arith.constant 0 : i32
    %c0_i32_1 = arith.constant 0 : i32
    return %c0_i32, %c0_i32_0 : i32, i32
  }
  func.func @transform_4(%arg0: i32) -> (i32, i32) {
    %c0_i32 = arith.constant 0 : i32
    %c0_i32_0 = arith.constant 0 : i32
    %c0_i32_1 = arith.constant 0 : i32
    return %c0_i32, %c0_i32_0 : i32, i32
  }
  func.func @transform_5(%arg0: i32) -> (i32, i32) {
    %c0_i32 = arith.constant 0 : i32
    %c0_i32_0 = arith.constant 0 : i32
    %c0_i32_1 = arith.constant 0 : i32
    return %c0_i32, %c0_i32_0 : i32, i32
  }
  func.func @transform_6(%arg0: i32) -> (i32, i32) {
    %c0_i32 = arith.constant 0 : i32
    %c0_i32_0 = arith.constant 0 : i32
    %c0_i32_1 = arith.constant 0 : i32
    return %c0_i32, %c0_i32_0 : i32, i32
  }
  func.func @transform_7(%arg0: i32) -> (i32, i32, i32) {
    %c0_i32 = arith.constant 0 : i32
    %c0_i32_0 = arith.constant 0 : i32
    %c0_i32_1 = arith.constant 0 : i32
    return %arg0, %c0_i32, %c0_i32_0 : i32, i32, i32
  }
}

</mosaic_0001>

<llo_original>
// kernel: tpu_custom_call.1
$region0: #{tpu_custom_call.1}
  #allocation0 [shape = 'u32[]', space=smem, size = 0x4, offset = 0x4, fixed_abs, tag = 'smem constant byte address 0x4 - core index']
  #allocation1 [shape = 'u32[144,128]{1,0:T(1,128)}', space=vmem, size = 0x12000, scoped, tag = 'internal scratch']
  %s0 = inlined_call_operand.hbm [shape: f32[2,8,2,8,8], index: 0, kind: input, shape index: {}]
  %s1 = inlined_call_operand.vmem [shape: f32[36,8], index: 1, kind: input, shape index: {}]
  %s2 = inlined_call_operand.vmem [shape: f32[1,8], index: 2, kind: input, shape index: {}]
  %s3 = inlined_call_operand.vmem [shape: f32[1,8], index: 3, kind: input, shape index: {}]
  %s4 = inlined_call_operand.vmem [shape: f32[72,8], index: 4, kind: input, shape index: {}]
  %s5 = inlined_call_operand.vmem [shape: f32[1,8], index: 5, kind: input, shape index: {}]
  %s6 = inlined_call_operand.vmem [shape: f32[1,8], index: 6, kind: input, shape index: {}]
  %s7 = inlined_call_operand.vmem [shape: f32[2,64,8], index: 7, kind: output, shape index: {}]
  %s8 = sld [smem:[#allocation0]]
  $region65: #{tpu_custom_call.1} parent=0
    _
  %s10 = ssub.s32 1, %s8
  %s11 = scalar_select 0, %s10, %s8
  $region1: #{tpu_custom_call.1} parent=0
    #allocation2 [shape = 'u8[131072]{0}', space=vmem, size = 0x20000, scoped, tag = 'input window, operand 0']
    #allocation3 [shape = 's32[2]{0}', space=sflag, size = 0x8, scoped, tag = 'scoped memory for tpu_custom_call.1']
    %12 = vsyncpa [#allocation3], 0
    %s13 = scalar_lea.sflag [#allocation3], 1
    %14 = vsyncpa %s13, 0
    loop: start=0, step=1, limit=4
    $region2: #{tpu_custom_call.1} parent=1 // loop_pre_header
      _
    $region3: #{tpu_custom_call.1} parent=1 // loop_header
      %s16 = sphi 0, %s20
      %p17 = scmp.ge.s32.totalorder %s16, 4
      %s26 = sphi 0, %s28
      %s29 = sphi 0, %s26
      %s30 = sphi 0, %s29
      %s46 = sphi 0, %s30
      %s50 = sphi 0, %s50
      %s52 = sphi 0, %s50
      %s53 = sphi 0, %s52
      %s67 = sphi 0, %s53
      %s71 = sphi 0, %s71
      %s73 = sphi 0, %s71
      %s74 = sphi 0, %s73
      %s88 = sphi 0, %s74
      %s92 = sphi 0, %s92
      %s94 = sphi 0, %s92
      %s95 = sphi 0, %s94
      %s109 = sphi 0, %s95
      %s113 = sphi 0, %s113
      %s115 = sphi 0, %s113
      %s116 = sphi 0, %s115
      %s130 = sphi 0, %s116
      %s134 = sphi 0, %s134
      %s136 = sphi 0, %s134
      %s137 = sphi 0, %s136
      %s151 = sphi 0, %s137
      %s155 = sphi 0, %s155
      %s157 = sphi 0, %s155
      %s158 = sphi 0, %s157
      %s172 = sphi 0, %s158
      %s178 = sphi 0, %s180
      %s181 = sphi 0, %s178
      %s182 = sphi 0, %s181
      %s198 = sphi 0, %s182
    $region4: #{tpu_custom_call.1} parent=1 // loop_header_branch
      %19 = sbr.rel (%p17) target = $region8
    $region5: #{tpu_custom_call.1} parent=1 // loop_body
      %s21 = ssub.s32 %s16, 1
      %s22 = ssub.s32 %s16, 2
      %s23 = sadd.s32 %s16, 1
      %s24 = ssub.s32 %s16, %s23
      %p25 = scmp.eq.s32.totalorder %s24, 0
      %s27 = sadd.s32 %s26, 1
      %s28 = scalar_select %p25, %s26, %s27
      %p31 = pneg %p25
      %p32 = scmp.eq.s32.totalorder %s16, 1
      %p33 = por %p31, %p32
      %p34 = scmp.ne.s32.totalorder %s26, %s29
      %p35 = scmp.eq.s32.totalorder %s16, 0
      %p36 = por %p34, %p35
      %p37 = scmp.ne.s32.totalorder %s26, %s29
      %p38 = scmp.eq.s32.totalorder %s21, 1
      %p39 = por %p37, %p38
      %p40 = scmp.ne.s32.totalorder %s29, %s30
      %p41 = scmp.eq.s32.totalorder %s21, 0
      %p42 = por %p40, %p41
      %p43 = scmp.ne.s32.totalorder %s29, %s30
      %p44 = scmp.eq.s32.totalorder %s22, 1
      %p45 = por %p43, %p44
      %p47 = scmp.ne.s32.totalorder %s30, %s46
      %p48 = scmp.eq.s32.totalorder %s22, 0
      %p49 = por %p47, %p48
      %s51 = sadd.s32 %s50, 1
      %p54 = scmp.eq.s32.totalorder %s16, 1
      %p55 = scmp.ne.s32.totalorder %s50, %s52
      %p56 = scmp.eq.s32.totalorder %s16, 0
      %p57 = por %p55, %p56
      %p58 = scmp.ne.s32.totalorder %s50, %s52
      %p59 = scmp.eq.s32.totalorder %s21, 1
      %p60 = por %p58, %p59
      %p61 = scmp.ne.s32.totalorder %s52, %s53
      %p62 = scmp.eq.s32.totalorder %s21, 0
      %p63 = por %p61, %p62
      %p64 = scmp.ne.s32.totalorder %s52, %s53
      %p65 = scmp.eq.s32.totalorder %s22, 1
      %p66 = por %p64, %p65
      %p68 = scmp.ne.s32.totalorder %s53, %s67
      %p69 = scmp.eq.s32.totalorder %s22, 0
      %p70 = por %p68, %p69
      %s72 = sadd.s32 %s71, 1
      %p75 = scmp.eq.s32.totalorder %s16, 1
      %p76 = scmp.ne.s32.totalorder %s71, %s73
      %p77 = scmp.eq.s32.totalorder %s16, 0
      %p78 = por %p76, %p77
      %p79 = scmp.ne.s32.totalorder %s71, %s73
      %p80 = scmp.eq.s32.totalorder %s21, 1
      %p81 = por %p79, %p80
      %p82 = scmp.ne.s32.totalorder %s73, %s74
      %p83 = scmp.eq.s32.totalorder %s21, 0
      %p84 = por %p82, %p83
      %p85 = scmp.ne.s32.totalorder %s73, %s74
      %p86 = scmp.eq.s32.totalorder %s22, 1
      %p87 = por %p85, %p86
      %p89 = scmp.ne.s32.totalorder %s74, %s88
      %p90 = scmp.eq.s32.totalorder %s22, 0
      %p91 = por %p89, %p90
      %s93 = sadd.s32 %s92, 1
      %p96 = scmp.eq.s32.totalorder %s16, 1
      %p97 = scmp.ne.s32.totalorder %s92, %s94
      %p98 = scmp.eq.s32.totalorder %s16, 0
      %p99 = por %p97, %p98
      %p100 = scmp.ne.s32.totalorder %s92, %s94
      %p101 = scmp.eq.s32.totalorder %s21, 1
      %p102 = por %p100, %p101
      %p103 = scmp.ne.s32.totalorder %s94, %s95
      %p104 = scmp.eq.s32.totalorder %s21, 0
      %p105 = por %p103, %p104
      %p106 = scmp.ne.s32.totalorder %s94, %s95
      %p107 = scmp.eq.s32.totalorder %s22, 1
      %p108 = por %p106, %p107
      %p110 = scmp.ne.s32.totalorder %s95, %s109
      %p111 = scmp.eq.s32.totalorder %s22, 0
      %p112 = por %p110, %p111
      %s114 = sadd.s32 %s113, 1
      %p117 = scmp.eq.s32.totalorder %s16, 1
      %p118 = scmp.ne.s32.totalorder %s113, %s115
      %p119 = scmp.eq.s32.totalorder %s16, 0
      %p120 = por %p118, %p119
      %p121 = scmp.ne.s32.totalorder %s113, %s115
      %p122 = scmp.eq.s32.totalorder %s21, 1
      %p123 = por %p121, %p122
      %p124 = scmp.ne.s32.totalorder %s115, %s116
      %p125 = scmp.eq.s32.totalorder %s21, 0
      %p126 = por %p124, %p125
      %p127 = scmp.ne.s32.totalorder %s115, %s116
      %p128 = scmp.eq.s32.totalorder %s22, 1
      %p129 = por %p127, %p128
      %p131 = scmp.ne.s32.totalorder %s116, %s130
      %p132 = scmp.eq.s32.totalorder %s22, 0
      %p133 = por %p131, %p132
      %s135 = sadd.s32 %s134, 1
      %p138 = scmp.eq.s32.totalorder %s16, 1
      %p139 = scmp.ne.s32.totalorder %s134, %s136
      %p140 = scmp.eq.s32.totalorder %s16, 0
      %p141 = por %p139, %p140
      %p142 = scmp.ne.s32.totalorder %s134, %s136
      %p143 = scmp.eq.s32.totalorder %s21, 1
      %p144 = por %p142, %p143
      %p145 = scmp.ne.s32.totalorder %s136, %s137
      %p146 = scmp.eq.s32.totalorder %s21, 0
      %p147 = por %p145, %p146
      %p148 = scmp.ne.s32.totalorder %s136, %s137
      %p149 = scmp.eq.s32.totalorder %s22, 1
      %p150 = por %p148, %p149
      %p152 = scmp.ne.s32.totalorder %s137, %s151
      %p153 = scmp.eq.s32.totalorder %s22, 0
      %p154 = por %p152, %p153
      %s156 = sadd.s32 %s155, 1
      %p159 = scmp.eq.s32.totalorder %s16, 1
      %p160 = scmp.ne.s32.totalorder %s155, %s157
      %p161 = scmp.eq.s32.totalorder %s16, 0
      %p162 = por %p160, %p161
      %p163 = scmp.ne.s32.totalorder %s155, %s157
      %p164 = scmp.eq.s32.totalorder %s21, 1
      %p165 = por %p163, %p164
      %p166 = scmp.ne.s32.totalorder %s157, %s158
      %p167 = scmp.eq.s32.totalorder %s21, 0
      %p168 = por %p166, %p167
      %p169 = scmp.ne.s32.totalorder %s157, %s158
      %p170 = scmp.eq.s32.totalorder %s22, 1
      %p171 = por %p169, %p170
      %p173 = scmp.ne.s32.totalorder %s158, %s172
      %p174 = scmp.eq.s32.totalorder %s22, 0
      %p175 = por %p173, %p174
      %s176 = ssub.s32 %s16, %s23
      %p177 = scmp.eq.s32.totalorder %s176, 0
      %s179 = sadd.s32 %s178, 1
      %s180 = scalar_select %p177, %s178, %s179
      %p183 = pneg %p177
      %p184 = scmp.eq.s32.totalorder %s16, 1
      %p185 = por %p183, %p184
      %p186 = scmp.ne.s32.totalorder %s178, %s181
      %p187 = scmp.eq.s32.totalorder %s16, 0
      %p188 = por %p186, %p187
      %p189 = scmp.ne.s32.totalorder %s178, %s181
      %p190 = scmp.eq.s32.totalorder %s21, 1
      %p191 = por %p189, %p190
      %p192 = scmp.ne.s32.totalorder %s181, %s182
      %p193 = scmp.eq.s32.totalorder %s21, 0
      %p194 = por %p192, %p193
      %p195 = scmp.ne.s32.totalorder %s181, %s182
      %p196 = scmp.eq.s32.totalorder %s22, 1
      %p197 = por %p195, %p196
      %p199 = scmp.ne.s32.totalorder %s182, %s198
      %p200 = scmp.eq.s32.totalorder %s22, 0
      %p201 = por %p199, %p200
      %p202 = scmp.le.s32.totalorder 1, %s16
      %p203 = scmp.lt.s32.totalorder %s16, 3
      %p204 = pnand %p202, %p203
      %p205 = pneg %p204
      // Predicated region
      $region9: #{tpu_custom_call.1} parent=5 // pred_check
        _
      $region10: #{tpu_custom_call.1} parent=5 // pred_check_branch
        %207 = sbr.rel (%p204) target = $region12
      $region11: #{tpu_custom_call.1} parent=5 // pred_region
        %s208 = ssub.s32 %s16, 1
        // Predicated region
        $region13: #{tpu_custom_call.1} parent=11 // pred_check
          %p209 = pneg %p63
        $region14: #{tpu_custom_call.1} parent=11 // pred_check_branch
          %211 = sbr.rel (%p209) target = $region16
        $region15: #{tpu_custom_call.1} parent=11 // pred_region
          _
        $region16: #{tpu_custom_call.1} parent=11 // pred_fallthru
          _
        // Predicated region
        $region17: #{tpu_custom_call.1} parent=11 // pred_check
          %p212 = pneg %p84
        $region18: #{tpu_custom_call.1} parent=11 // pred_check_branch
          %214 = sbr.rel (%p212) target = $region20
        $region19: #{tpu_custom_call.1} parent=11 // pred_region
          _
        $region20: #{tpu_custom_call.1} parent=11 // pred_fallthru
          _
        // Predicated region
        $region21: #{tpu_custom_call.1} parent=11 // pred_check
          %p215 = pneg %p105
        $region22: #{tpu_custom_call.1} parent=11 // pred_check_branch
          %217 = sbr.rel (%p215) target = $region24
        $region23: #{tpu_custom_call.1} parent=11 // pred_region
          _
        $region24: #{tpu_custom_call.1} parent=11 // pred_fallthru
          _
        // Predicated region
        $region25: #{tpu_custom_call.1} parent=11 // pred_check
          %p218 = pneg %p126
        $region26: #{tpu_custom_call.1} parent=11 // pred_check_branch
          %220 = sbr.rel (%p218) target = $region28
        $region27: #{tpu_custom_call.1} parent=11 // pred_region
          _
        $region28: #{tpu_custom_call.1} parent=11 // pred_fallthru
          _
        // Predicated region
        $region29: #{tpu_custom_call.1} parent=11 // pred_check
          %p221 = pneg %p147
        $region30: #{tpu_custom_call.1} parent=11 // pred_check_branch
          %223 = sbr.rel (%p221) target = $region32
        $region31: #{tpu_custom_call.1} parent=11 // pred_region
          _
        $region32: #{tpu_custom_call.1} parent=11 // pred_fallthru
          _
        // Predicated region
        $region33: #{tpu_custom_call.1} parent=11 // pred_check
          %p224 = pneg %p168
        $region34: #{tpu_custom_call.1} parent=11 // pred_check_branch
          %226 = sbr.rel (%p224) target = $region36
        $region35: #{tpu_custom_call.1} parent=11 // pred_region
          _
        $region36: #{tpu_custom_call.1} parent=11 // pred_fallthru
          _
      $region12: #{tpu_custom_call.1} parent=5 // pred_fallthru
        _
      %p227 = scmp.lt.s32.totalorder %s16, 2
      // Predicated region
      $region37: #{tpu_custom_call.1} parent=5 // pred_check
        %p228 = pneg %p227
      $region38: #{tpu_custom_call.1} parent=5 // pred_check_branch
        %230 = sbr.rel (%p228) target = $region40
      $region39: #{tpu_custom_call.1} parent=5 // pred_region
        // Predicated region
        $region41: #{tpu_custom_call.1} parent=39 // pred_check
          %p231 = pneg %p36
        $region42: #{tpu_custom_call.1} parent=39 // pred_check_branch
          %233 = sbr.rel (%p231) target = $region44
        $region43: #{tpu_custom_call.1} parent=39 // pred_region
          %s234 = sand.u32 %s26, 1
          %s235 = scalar_lea.sflag [#allocation3], %s234
          %s236 = sand.u32 %s26, 1
          %s237 = smul.addr %s236, 128
          %s238 = scalar_lea.vmem [#allocation2], %s237
          %s240 = ssub.s32 2048, 2048
          %241 = vsyncadd %s235, %s240
          %s242 = smul.addr %s16, 16
          %s243 = smul.addr %s242, 128
          %s244 = scalar_lea.hbm %s0, %s243
          %s245 = sshll.u32 %s238, 4
          %s246 = int_to_ptr.vmem [resolvable:$true] %s245
          %251 = dma.hbm_to_vmem [thread:$0]  %s244, 2048, %s246, %s235, 128, 128, 8
        $region44: #{tpu_custom_call.1} parent=39 // pred_fallthru
          _
      $region40: #{tpu_custom_call.1} parent=5 // pred_fallthru
        _
      %p252 = scmp.le.s32.totalorder 1, %s16
      %p253 = scmp.lt.s32.totalorder %s16, 3
      %p254 = pnand %p252, %p253
      %p255 = pneg %p254
      // Predicated region
      $region45: #{tpu_custom_call.1} parent=5 // pred_check
        _
      $region46: #{tpu_custom_call.1} parent=5 // pred_check_branch
        %257 = sbr.rel (%p254) target = $region48
      $region47: #{tpu_custom_call.1} parent=5 // pred_region
        %s258 = ssub.s32 %s16, 1
        %s259 = sand.u32 %s29, 1
        %s260 = scalar_lea.sflag [#allocation3], %s259
        %s261 = sand.u32 %s29, 1
        %s262 = smul.addr %s261, 128
        %s263 = scalar_lea.vmem [#allocation2], %s262
        // Predicated region
        $region49: #{tpu_custom_call.1} parent=47 // pred_check
          %p264 = pneg %p42
        $region50: #{tpu_custom_call.1} parent=47 // pred_check_branch
          %266 = sbr.rel (%p264) target = $region52
        $region51: #{tpu_custom_call.1} parent=47 // pred_region
          %267 = dma.done %s260, 2048
        $region52: #{tpu_custom_call.1} parent=47 // pred_fallthru
          _
        %s268 = sand.u32 %s29, 1
        %s269 = scalar_lea.sflag [#allocation3], %s268
        %s270 = sand.u32 %s29, 1
        %s271 = smul.addr %s270, 128
        %s272 = scalar_lea.vmem [#allocation2], %s271
        %p273 = pneg %p42
        %p274 = pneg %p39
        %p275 = pneg %p63
        %p276 = pneg %p60
        %p277 = pneg %p84
        %p278 = pneg %p81
        %p279 = pneg %p105
        %p280 = pneg %p102
        %p281 = pneg %p126
        %p282 = pneg %p123
        %p283 = pneg %p147
        %p284 = pneg %p144
        %p285 = pneg %p168
        %p286 = pneg %p165
        %p287 = pneg %p194
        %p288 = pneg %p191
        %p289 = scmp.lt.s32.totalorder %s21, 1
        %s290 = scalar_select %p289, %s21, 1
        %s291 = smul.addr %s290, 8
        %s292 = smul.addr %s291, 8
        %s293 = scalar_lea.vmem %s7, %s292
        %p294 = scmp.lt.s32.totalorder %s21, 1
        %s295 = scalar_select %p294, %s21, 1
        %s296 = smul.addr %s295, 8
        %s297 = smul.addr %s296, 8
        %s298 = scalar_lea.vmem %s7, %s297
        %v299 = vld [vmem:[%s263] sm:$0xff]
        %v300 = vld [vmem:[%s263 + $0x8] sm:$0xff]
        %v301 = vld [vmem:[%s263 + $0x10] sm:$0xff]
        %v302 = vld [vmem:[%s263 + $0x18] sm:$0xff]
        %v303 = vld [vmem:[%s263 + $0x20] sm:$0xff]
        %v304 = vld [vmem:[%s263 + $0x28] sm:$0xff]
        %v305 = vld [vmem:[%s263 + $0x30] sm:$0xff]
        %v306 = vld [vmem:[%s263 + $0x38] sm:$0xff]
        %v307 = vld [vmem:[%s263 + $0x40] sm:$0xff]
        %v308 = vld [vmem:[%s263 + $0x48] sm:$0xff]
        %v309 = vld [vmem:[%s263 + $0x50] sm:$0xff]
        %v310 = vld [vmem:[%s263 + $0x58] sm:$0xff]
        %v311 = vld [vmem:[%s263 + $0x60] sm:$0xff]
        %v312 = vld [vmem:[%s263 + $0x68] sm:$0xff]
        %v313 = vld [vmem:[%s263 + $0x70] sm:$0xff]
        %v314 = vld [vmem:[%s263 + $0x78] sm:$0xff]
        %v315 = vmax.f32 %v299, %v300
        %v316 = vmax.f32 %v301, %v302
        %v317 = vmax.f32 %v303, %v304
        %v318 = vmax.f32 %v305, %v306
        %v319 = vmax.f32 %v307, %v308
        %v320 = vmax.f32 %v309, %v310
        %v321 = vmax.f32 %v311, %v312
        %v322 = vmax.f32 %v313, %v314
        %331 = vrot.lane.b32.xlu0 %v315, 124
        %v332 = vpop.permute.xlu0 %331
        %333 = vrot.lane.b32.xlu0 %v316, 124
        %v334 = vpop.permute.xlu0 %333
        %335 = vrot.lane.b32.xlu0 %v317, 124
        %v336 = vpop.permute.xlu0 %335
        %337 = vrot.lane.b32.xlu0 %v318, 124
        %v338 = vpop.permute.xlu0 %337
        %339 = vrot.lane.b32.xlu0 %v319, 124
        %v340 = vpop.permute.xlu0 %339
        %341 = vrot.lane.b32.xlu0 %v320, 124
        %v342 = vpop.permute.xlu0 %341
        %343 = vrot.lane.b32.xlu0 %v321, 124
        %v344 = vpop.permute.xlu0 %343
        %345 = vrot.lane.b32.xlu0 %v322, 124
        %v346 = vpop.permute.xlu0 %345
        %v355 = vmax.f32 %v315, %v332
        %v356 = vmax.f32 %v316, %v334
        %v357 = vmax.f32 %v317, %v336
        %v358 = vmax.f32 %v318, %v338
        %v359 = vmax.f32 %v319, %v340
        %v360 = vmax.f32 %v320, %v342
        %v361 = vmax.f32 %v321, %v344
        %v362 = vmax.f32 %v322, %v346
        %v371 = vrot.slane %v355, 1
        %v372 = vrot.slane %v356, 1
        %v373 = vrot.slane %v357, 1
        %v374 = vrot.slane %v358, 1
        %v375 = vrot.slane %v359, 1
        %v376 = vrot.slane %v360, 1
        %v377 = vrot.slane %v361, 1
        %v378 = vrot.slane %v362, 1
        %v387 = vrot.slane %v355, 7
        %v388 = vrot.slane %v356, 7
        %v389 = vrot.slane %v357, 7
        %v390 = vrot.slane %v358, 7
        %v391 = vrot.slane %v359, 7
        %v392 = vrot.slane %v360, 7
        %v393 = vrot.slane %v361, 7
        %v394 = vrot.slane %v362, 7
        %v403 = vrot.slane %v355, 5
        %v404 = vrot.slane %v356, 5
        %v405 = vrot.slane %v357, 5
        %v406 = vrot.slane %v358, 5
        %v407 = vrot.slane %v359, 5
        %v408 = vrot.slane %v360, 5
        %v409 = vrot.slane %v361, 5
        %v410 = vrot.slane %v362, 5
        %vm419 = vcmask 1040384
        %v420 = vsel %vm419, %v371, %v387
        %v421 = vsel %vm419, %v372, %v388
        %v422 = vsel %vm419, %v373, %v389
        %v423 = vsel %vm419, %v374, %v390
        %v424 = vsel %vm419, %v375, %v391
        %v425 = vsel %vm419, %v376, %v392
        %v426 = vsel %vm419, %v377, %v393
        %v427 = vsel %vm419, %v378, %v394
        %v428 = vsel %vm419, %v387, %v403
        %v429 = vsel %vm419, %v388, %v404
        %v430 = vsel %vm419, %v389, %v405
        %v431 = vsel %vm419, %v390, %v406
        %v432 = vsel %vm419, %v391, %v407
        %v433 = vsel %vm419, %v392, %v408
        %v434 = vsel %vm419, %v393, %v409
        %v435 = vsel %vm419, %v394, %v410
        %vm452 = vcmask 1046528
        %v453 = vrot.slane %v421, 1
        %v454 = vrot.slane %v429, 1
        %v455 = vsel %vm452, %v453, %v454
        %v456 = vrot.slane %v420, 1
        %v457 = vrot.slane %v428, 1
        %v458 = vsel %vm452, %v456, %v457
        %v459 = vrot.slane %v422, 1
        %v460 = vrot.slane %v430, 1
        %v461 = vsel %vm452, %v459, %v460
        %v462 = vrot.slane %v423, 1
        %v463 = vrot.slane %v431, 1
        %v464 = vsel %vm452, %v462, %v463
        %v465 = vrot.slane %v424, 1
        %v466 = vrot.slane %v432, 1
        %v467 = vsel %vm452, %v465, %v466
        %v468 = vrot.slane %v425, 1
        %v469 = vrot.slane %v433, 1
        %v470 = vsel %vm452, %v468, %v469
        %v471 = vrot.slane %v426, 1
        %v472 = vrot.slane %v434, 1
        %v473 = vsel %vm452, %v471, %v472
        %v474 = vrot.slane %v427, 1
        %v475 = vrot.slane %v435, 1
        %v476 = vsel %vm452, %v474, %v475
        %477 = vrot.lane.b32.xlu0 %v455, 4
        %v478 = vpop.permute.xlu0 %477
        %479 = vrot.lane.b32.xlu0 %v458, 4
        %v480 = vpop.permute.xlu0 %479
        %481 = vrot.lane.b32.xlu0 %v461, 4
        %v482 = vpop.permute.xlu0 %481
        %483 = vrot.lane.b32.xlu0 %v464, 4
        %v484 = vpop.permute.xlu0 %483
        %485 = vrot.lane.b32.xlu0 %v467, 4
        %v486 = vpop.permute.xlu0 %485
        %487 = vrot.lane.b32.xlu0 %v470, 4
        %v488 = vpop.permute.xlu0 %487
        %489 = vrot.lane.b32.xlu0 %v473, 4
        %v490 = vpop.permute.xlu0 %489
        %491 = vrot.lane.b32.xlu0 %v476, 4
        %v492 = vpop.permute.xlu0 %491
        %vm501 = vcmask 1045504
        %v502 = vrot.slane %v421, 2
        %v503 = vrot.slane %v429, 2
        %v504 = vsel %vm501, %v502, %v503
        %v505 = vrot.slane %v420, 2
        %v506 = vrot.slane %v428, 2
        %v507 = vsel %vm501, %v505, %v506
        %v508 = vrot.slane %v422, 2
        %v509 = vrot.slane %v430, 2
        %v510 = vsel %vm501, %v508, %v509
        %v511 = vrot.slane %v423, 2
        %v512 = vrot.slane %v431, 2
        %v513 = vsel %vm501, %v511, %v512
        %v514 = vrot.slane %v424, 2
        %v515 = vrot.slane %v432, 2
        %v516 = vsel %vm501, %v514, %v515
        %v517 = vrot.slane %v425, 2
        %v518 = vrot.slane %v433, 2
        %v519 = vsel %vm501, %v517, %v518
        %v520 = vrot.slane %v426, 2
        %v521 = vrot.slane %v434, 2
        %v522 = vsel %vm501, %v520, %v521
        %v523 = vrot.slane %v427, 2
        %v524 = vrot.slane %v435, 2
        %v525 = vsel %vm501, %v523, %v524
        %526 = vrot.lane.b32.xlu0 %v504, 8
        %v527 = vpop.permute.xlu0 %526
        %528 = vrot.lane.b32.xlu0 %v507, 8
        %v529 = vpop.permute.xlu0 %528
        %530 = vrot.lane.b32.xlu0 %v510, 8
        %v531 = vpop.permute.xlu0 %530
        %532 = vrot.lane.b32.xlu0 %v513, 8
        %v533 = vpop.permute.xlu0 %532
        %534 = vrot.lane.b32.xlu0 %v516, 8
        %v535 = vpop.permute.xlu0 %534
        %536 = vrot.lane.b32.xlu0 %v519, 8
        %v537 = vpop.permute.xlu0 %536
        %538 = vrot.lane.b32.xlu0 %v522, 8
        %v539 = vpop.permute.xlu0 %538
        %540 = vrot.lane.b32.xlu0 %v525, 8
        %v541 = vpop.permute.xlu0 %540
        %vm550 = vcmask 31744
        %v551 = vsel %vm550, %v421, %v478
        %v552 = vsel %vm550, %v420, %v480
        %v553 = vsel %vm550, %v422, %v482
        %v554 = vsel %vm550, %v423, %v484
        %v555 = vsel %vm550, %v424, %v486
        %v556 = vsel %vm550, %v425, %v488
        %v557 = vsel %vm550, %v426, %v490
        %v558 = vsel %vm550, %v427, %v492
        %vm559 = vcmask 64512
        %v560 = vsel %vm559, %v551, %v527
        %v561 = vsel %vm559, %v552, %v529
        %v562 = vsel %vm559, %v553, %v531
        %v563 = vsel %vm559, %v554, %v533
        %v564 = vsel %vm559, %v555, %v535
        %v565 = vsel %vm559, %v556, %v537
        %v566 = vsel %vm559, %v557, %v539
        %v567 = vsel %vm559, %v558, %v541
        %576 = vrot.lane.b32.xlu0 %v561, 12
        %v577 = vpop.permute.xlu0 %576
        %578 = vrot.lane.b32.xlu0 %v560, 12
        %v579 = vpop.permute.xlu0 %578
        %580 = vrot.lane.b32.xlu0 %v562, 12
        %v581 = vpop.permute.xlu0 %580
        %582 = vrot.lane.b32.xlu0 %v563, 12
        %v583 = vpop.permute.xlu0 %582
        %584 = vrot.lane.b32.xlu0 %v564, 12
        %v585 = vpop.permute.xlu0 %584
        %586 = vrot.lane.b32.xlu0 %v565, 12
        %v587 = vpop.permute.xlu0 %586
        %588 = vrot.lane.b32.xlu0 %v566, 12
        %v589 = vpop.permute.xlu0 %588
        %590 = vrot.lane.b32.xlu0 %v567, 12
        %v591 = vpop.permute.xlu0 %590
        %600 = vrot.lane.b32.xlu0 %v560, 24
        %v601 = vpop.permute.xlu0 %600
        %602 = vrot.lane.b32.xlu0 %v562, 24
        %v603 = vpop.permute.xlu0 %602
        %604 = vrot.lane.b32.xlu0 %v563, 24
        %v605 = vpop.permute.xlu0 %604
        %606 = vrot.lane.b32.xlu0 %v564, 24
        %v607 = vpop.permute.xlu0 %606
        %608 = vrot.lane.b32.xlu0 %v565, 24
        %v609 = vpop.permute.xlu0 %608
        %610 = vrot.lane.b32.xlu0 %v566, 24
        %v611 = vpop.permute.xlu0 %610
        %612 = vrot.lane.b32.xlu0 %v567, 24
        %v613 = vpop.permute.xlu0 %612
        %vm621 = vcmask 97280
        %v622 = vsel %vm621, %v560, %v577
        %v623 = vsel %vm621, %v561, %v579
        %v624 = vsel %vm621, %v560, %v581
        %v625 = vsel %vm621, %v562, %v583
        %v626 = vsel %vm621, %v563, %v585
        %v627 = vsel %vm621, %v564, %v587
        %v628 = vsel %vm621, %v565, %v589
        %v629 = vsel %vm621, %v566, %v591
        %vm630 = vcmask 195584
        %v631 = vsel %vm630, %v622, %v601
        %v632 = vsel %vm630, %v623, %v603
        %v633 = vsel %vm630, %v624, %v605
        %v634 = vsel %vm630, %v625, %v607
        %v635 = vsel %vm630, %v626, %v609
        %v636 = vsel %vm630, %v627, %v611
        %v637 = vsel %vm630, %v628, %v613
        %v638 = vsel %vm630, %v629, %v611
        %v639 = vld [vmem:[%s1] sm:$0xff]
        %v640 = vld [vmem:[%s1 + $0x8] sm:$0xff]
        %v641 = vld [vmem:[%s1 + $0x10] sm:$0xff]
        %v642 = vld [vmem:[%s1 + $0x18] sm:$0xff]
        %v643 = vld [vmem:[%s1 + $0x20] sm:$0xf]
        %vm644 = vcmask 293888
        %v646 = vsel %vm644, %v631, 0
        %v649 = vsel %vm644, %v632, 0
        %v652 = vsel %vm644, %v633, 0
        %v655 = vsel %vm644, %v634, 0
        %v658 = vsel %vm644, %v635, 0
        %v661 = vsel %vm644, %v636, 0
        %v664 = vsel %vm644, %v637, 0
        %v667 = vsel %vm644, %v638, 0
        %vm669 = vcmask 1043456
        %v671 = vsel %vm669, %v643, 0
        %673 = vmatprep.subr.mxu0 0.0
        %674 = vmatpush1.msra.mxu0 %v639
        %675 = vmatprep.subr.mxu0 0.0
        %676 = vmatpush1.msra.mxu0 %v640
        %677 = vmatprep.subr.mxu0 0.0
        %678 = vmatpush1.msra.mxu0 %v641
        %679 = vmatprep.subr.mxu0 0.0
        %680 = vmatpush1.msra.mxu0 %v642
        %681 = vmatprep.subr.mxu0 0.0
        %682 = vmatpush1.msra.mxu0 %v671
        %683 = vmatprep.subr.mxu0 0.0
        %684 = vmatpush1.msra.mxu0 0.0
        %685 = vmatprep.subr.mxu0 0.0
        %686 = vmatpush1.msra.mxu0 0.0
        %687 = vmatprep.subr.mxu0 0.0
        %688 = vmatpush1.msra.mxu0 0.0
        %689 = vmatprep.subr.mxu0 0.0
        %690 = vmatpush1.msra.mxu0 0.0
        %691 = vmatprep.subr.mxu0 0.0
        %692 = vmatpush1.msra.mxu0 0.0
        %693 = vmatprep.subr.mxu0 0.0
        %694 = vmatpush1.msra.mxu0 0.0
        %695 = vmatprep.subr.mxu0 0.0
        %696 = vmatpush1.msra.mxu0 0.0
        %697 = vmatprep.subr.mxu0 0.0
        %698 = vmatpush1.msra.mxu0 0.0
        %699 = vmatprep.subr.mxu0 0.0
        %700 = vmatpush1.msra.mxu0 0.0
        %701 = vmatprep.subr.mxu0 0.0
        %702 = vmatpush1.msra.mxu0 0.0
        %703 = vmatprep.subr.mxu0 0.0
        %704 = vmatpush1.msra.mxu0 0.0
        %705 = vmatprep.subr.mxu0 0.0
        %706 = vmatpush1.msra.mxu0 0.0
        %707 = vmatprep.subr.mxu0 0.0
        %708 = vmatpush1.msra.mxu0 0.0
        %709 = vmatprep.subr.mxu0 0.0
        %710 = vmatpush1.msra.mxu0 0.0
        %711 = vmatprep.subr.mxu0 0.0
        %712 = vmatpush1.msra.mxu0 0.0
        %713 = vmatprep.subr.mxu0 0.0
        %714 = vmatpush1.msra.mxu0 0.0
        %715 = vmatprep.subr.mxu0 0.0
        %716 = vmatpush1.msra.mxu0 0.0
        %717 = vmatprep.subr.mxu0 0.0
        %718 = vmatpush1.msra.mxu0 0.0
        %719 = vmatprep.subr.mxu0 0.0
        %720 = vmatpush1.msra.mxu0 0.0
        %721 = vmatprep.subr.mxu0 0.0
        %722 = vmatpush1.msra.mxu0 0.0
        %723 = vmatprep.subr.mxu0 0.0
        %724 = vmatpush1.msra.mxu0 0.0
        %725 = vmatprep.subr.mxu0 0.0
        %726 = vmatpush1.msra.mxu0 0.0
        %727 = vmatprep.subr.mxu0 0.0
        %728 = vmatpush1.msra.mxu0 0.0
        %729 = vmatprep.subr.mxu0 0.0
        %730 = vmatpush1.msra.mxu0 0.0
        %731 = vmatprep.subr.mxu0 0.0
        %732 = vmatpush1.msra.mxu0 0.0
        %733 = vmatprep.subr.mxu0 0.0
        %734 = vmatpush1.msra.mxu0 0.0
        %735 = vmatprep.subr.mxu0 0.0
        %736 = vmatpush1.msra.mxu0 0.0
        %737 = vmatprep.mubr.f32.mxu0 0.0
        %738 = vmatmul.mubr.f32.gmra.mrb[0].mxu0 %v646
        %v739 = vpop.f32.mrb[0].mxu0
        %v740 = vadd.f32 0.0, %v739
        %v741 = vpop.f32.mrb[0].mxu0
        %742 = vmatprep.mubr.f32.mxu0 0.0
        %743 = vmatmul.mubr.f32.gmra.mrb[0].mxu0 %v649
        %v744 = vpop.f32.mrb[0].mxu0
        %v745 = vadd.f32 0.0, %v744
        %v746 = vpop.f32.mrb[0].mxu0
        %747 = vmatprep.mubr.f32.mxu0 0.0
        %748 = vmatmul.mubr.f32.gmra.mrb[0].mxu0 %v652
        %v749 = vpop.f32.mrb[0].mxu0
        %v750 = vadd.f32 0.0, %v749
        %v751 = vpop.f32.mrb[0].mxu0
        %752 = vmatprep.mubr.f32.mxu0 0.0
        %753 = vmatmul.mubr.f32.gmra.mrb[0].mxu0 %v655
        %v754 = vpop.f32.mrb[0].mxu0
        %v755 = vadd.f32 0.0, %v754
        %v756 = vpop.f32.mrb[0].mxu0
        %757 = vmatprep.mubr.f32.mxu0 0.0
        %758 = vmatmul.mubr.f32.gmra.mrb[0].mxu0 %v658
        %v759 = vpop.f32.mrb[0].mxu0
        %v760 = vadd.f32 0.0, %v759
        %v761 = vpop.f32.mrb[0].mxu0
        %762 = vmatprep.mubr.f32.mxu0 0.0
        %763 = vmatmul.mubr.f32.gmra.mrb[0].mxu0 %v661
        %v764 = vpop.f32.mrb[0].mxu0
        %v765 = vadd.f32 0.0, %v764
        %v766 = vpop.f32.mrb[0].mxu0
        %767 = vmatprep.mubr.f32.mxu0 0.0
        %768 = vmatmul.mubr.f32.gmra.mrb[0].mxu0 %v664
        %v769 = vpop.f32.mrb[0].mxu0
        %v770 = vadd.f32 0.0, %v769
        %v771 = vpop.f32.mrb[0].mxu0
        %772 = vmatprep.mubr.f32.mxu0 0.0
        %773 = vmatmul.mubr.f32.gmra.mrb[0].mxu0 %v667
        %v774 = vpop.f32.mrb[0].mxu0
        %v775 = vadd.f32 0.0, %v774
        %v776 = vpop.f32.mrb[0].mxu0
        %777 = vdwg.mxu0
        %v778 = vld [vmem:[%s2] sm:$0x1]
        %v780 = vlaneseq
        %v781 = vshrl.u32 %v780, 7
        %v782 = vsub.s32 0, %v781
        %v783 = vrot.slane %v778, %v782
        %v785 = vmul.f32 %v740, %v783
        %v786 = vmul.f32 %v745, %v783
        %v787 = vmul.f32 %v750, %v783
        %v788 = vmul.f32 %v755, %v783
        %v789 = vmul.f32 %v760, %v783
        %v790 = vmul.f32 %v765, %v783
        %v791 = vmul.f32 %v770, %v783
        %v792 = vmul.f32 %v775, %v783
        %v793 = vld [vmem:[%s3] sm:$0x1]
        %v795 = vlaneseq
        %v796 = vshrl.u32 %v795, 7
        %v797 = vsub.s32 0, %v796
        %v798 = vrot.slane %v793, %v797
        %v800 = vadd.f32 %v785, %v798
        %v801 = vadd.f32 %v786, %v798
        %v802 = vadd.f32 %v787, %v798
        %v803 = vadd.f32 %v788, %v798
        %v804 = vadd.f32 %v789, %v798
        %v805 = vadd.f32 %v790, %v798
        %v806 = vadd.f32 %v791, %v798
        %v807 = vadd.f32 %v792, %v798
        %v808 = vmax.f32 %v800, 0.0
        %v809 = vmax.f32 %v801, 0.0
        %v810 = vmax.f32 %v802, 0.0
        %v811 = vmax.f32 %v803, 0.0
        %v812 = vmax.f32 %v804, 0.0
        %v813 = vmax.f32 %v805, 0.0
        %v814 = vmax.f32 %v806, 0.0
        %v815 = vmax.f32 %v807, 0.0
        %v824 = vrot.slane %v808, 1
        %v825 = vrot.slane %v809, 1
        %v826 = vrot.slane %v810, 1
        %v827 = vrot.slane %v811, 1
        %v828 = vrot.slane %v812, 1
        %v829 = vrot.slane %v813, 1
        %v830 = vrot.slane %v814, 1
        %v831 = vrot.slane %v815, 1
        %v840 = vrot.slane %v808, 7
        %v841 = vrot.slane %v809, 7
        %v842 = vrot.slane %v810, 7
        %v843 = vrot.slane %v811, 7
        %v844 = vrot.slane %v812, 7
        %v845 = vrot.slane %v813, 7
        %v846 = vrot.slane %v814, 7
        %v847 = vrot.slane %v815, 7
        %v856 = vrot.slane %v808, 5
        %v857 = vrot.slane %v809, 5
        %v858 = vrot.slane %v810, 5
        %v859 = vrot.slane %v811, 5
        %v860 = vrot.slane %v812, 5
        %v861 = vrot.slane %v813, 5
        %v862 = vrot.slane %v814, 5
        %v863 = vrot.slane %v815, 5
        %v872 = vsel %vm419, %v824, %v840
        %v873 = vsel %vm419, %v825, %v841
        %v874 = vsel %vm419, %v826, %v842
        %v875 = vsel %vm419, %v827, %v843
        %v876 = vsel %vm419, %v828, %v844
        %v877 = vsel %vm419, %v829, %v845
        %v878 = vsel %vm419, %v830, %v846
        %v879 = vsel %vm419, %v831, %v847
        %v880 = vsel %vm419, %v840, %v856
        %v881 = vsel %vm419, %v841, %v857
        %v882 = vsel %vm419, %v842, %v858
        %v883 = vsel %vm419, %v843, %v859
        %v884 = vsel %vm419, %v844, %v860
        %v885 = vsel %vm419, %v845, %v861
        %v886 = vsel %vm419, %v846, %v862
        %v887 = vsel %vm419, %v847, %v863
        %v904 = vrot.slane %v873, 1
        %v905 = vrot.slane %v881, 1
        %v906 = vsel %vm452, %v904, %v905
        %v907 = vrot.slane %v872, 1
        %v908 = vrot.slane %v880, 1
        %v909 = vsel %vm452, %v907, %v908
        %v910 = vrot.slane %v874, 1
        %v911 = vrot.slane %v882, 1
        %v912 = vsel %vm452, %v910, %v911
        %v913 = vrot.slane %v875, 1
        %v914 = vrot.slane %v883, 1
        %v915 = vsel %vm452, %v913, %v914
        %v916 = vrot.slane %v876, 1
        %v917 = vrot.slane %v884, 1
        %v918 = vsel %vm452, %v916, %v917
        %v919 = vrot.slane %v877, 1
        %v920 = vrot.slane %v885, 1
        %v921 = vsel %vm452, %v919, %v920
        %v922 = vrot.slane %v878, 1
        %v923 = vrot.slane %v886, 1
        %v924 = vsel %vm452, %v922, %v923
        %v925 = vrot.slane %v879, 1
        %v926 = vrot.slane %v887, 1
        %v927 = vsel %vm452, %v925, %v926
        %928 = vrot.lane.b32.xlu0 %v906, 8
        %v929 = vpop.permute.xlu0 %928
        %930 = vrot.lane.b32.xlu0 %v909, 8
        %v931 = vpop.permute.xlu0 %930
        %932 = vrot.lane.b32.xlu0 %v912, 8
        %v933 = vpop.permute.xlu0 %932
        %934 = vrot.lane.b32.xlu0 %v915, 8
        %v935 = vpop.permute.xlu0 %934
        %936 = vrot.lane.b32.xlu0 %v918, 8
        %v937 = vpop.permute.xlu0 %936
        %938 = vrot.lane.b32.xlu0 %v921, 8
        %v939 = vpop.permute.xlu0 %938
        %940 = vrot.lane.b32.xlu0 %v924, 8
        %v941 = vpop.permute.xlu0 %940
        %942 = vrot.lane.b32.xlu0 %v927, 8
        %v943 = vpop.permute.xlu0 %942
        %v952 = vrot.slane %v873, 2
        %v953 = vrot.slane %v881, 2
        %v954 = vsel %vm501, %v952, %v953
        %v955 = vrot.slane %v872, 2
        %v956 = vrot.slane %v880, 2
        %v957 = vsel %vm501, %v955, %v956
        %v958 = vrot.slane %v874, 2
        %v959 = vrot.slane %v882, 2
        %v960 = vsel %vm501, %v958, %v959
        %v961 = vrot.slane %v875, 2
        %v962 = vrot.slane %v883, 2
        %v963 = vsel %vm501, %v961, %v962
        %v964 = vrot.slane %v876, 2
        %v965 = vrot.slane %v884, 2
        %v966 = vsel %vm501, %v964, %v965
        %v967 = vrot.slane %v877, 2
        %v968 = vrot.slane %v885, 2
        %v969 = vsel %vm501, %v967, %v968
        %v970 = vrot.slane %v878, 2
        %v971 = vrot.slane %v886, 2
        %v972 = vsel %vm501, %v970, %v971
        %v973 = vrot.slane %v879, 2
        %v974 = vrot.slane %v887, 2
        %v975 = vsel %vm501, %v973, %v974
        %976 = vrot.lane.b32.xlu0 %v954, 16
        %v977 = vpop.permute.xlu0 %976
        %978 = vrot.lane.b32.xlu0 %v957, 16
        %v979 = vpop.permute.xlu0 %978
        %980 = vrot.lane.b32.xlu0 %v960, 16
        %v981 = vpop.permute.xlu0 %980
        %982 = vrot.lane.b32.xlu0 %v963, 16
        %v983 = vpop.permute.xlu0 %982
        %984 = vrot.lane.b32.xlu0 %v966, 16
        %v985 = vpop.permute.xlu0 %984
        %986 = vrot.lane.b32.xlu0 %v969, 16
        %v987 = vpop.permute.xlu0 %986
        %988 = vrot.lane.b32.xlu0 %v972, 16
        %v989 = vpop.permute.xlu0 %988
        %990 = vrot.lane.b32.xlu0 %v975, 16
        %v991 = vpop.permute.xlu0 %990
        %v1000 = vsel %vm559, %v873, %v929
        %v1001 = vsel %vm559, %v872, %v931
        %v1002 = vsel %vm559, %v874, %v933
        %v1003 = vsel %vm559, %v875, %v935
        %v1004 = vsel %vm559, %v876, %v937
        %v1005 = vsel %vm559, %v877, %v939
        %v1006 = vsel %vm559, %v878, %v941
        %v1007 = vsel %vm559, %v879, %v943
        %vm1008 = vcmask 130048
        %v1009 = vsel %vm1008, %v1000, %v977
        %v1010 = vsel %vm1008, %v1001, %v979
        %v1011 = vsel %vm1008, %v1002, %v981
        %v1012 = vsel %vm1008, %v1003, %v983
        %v1013 = vsel %vm1008, %v1004, %v985
        %v1014 = vsel %vm1008, %v1005, %v987
        %v1015 = vsel %vm1008, %v1006, %v989
        %v1016 = vsel %vm1008, %v1007, %v991
        %1025 = vrot.lane.b32.xlu0 %v1010, 24
        %v1026 = vpop.permute.xlu0 %1025
        %1027 = vrot.lane.b32.xlu0 %v1009, 24
        %v1028 = vpop.permute.xlu0 %1027
        %1029 = vrot.lane.b32.xlu0 %v1011, 24
        %v1030 = vpop.permute.xlu0 %1029
        %1031 = vrot.lane.b32.xlu0 %v1012, 24
        %v1032 = vpop.permute.xlu0 %1031
        %1033 = vrot.lane.b32.xlu0 %v1013, 24
        %v1034 = vpop.permute.xlu0 %1033
        %1035 = vrot.lane.b32.xlu0 %v1014, 24
        %v1036 = vpop.permute.xlu0 %1035
        %1037 = vrot.lane.b32.xlu0 %v1015, 24
        %v1038 = vpop.permute.xlu0 %1037
        %1039 = vrot.lane.b32.xlu0 %v1016, 24
        %v1040 = vpop.permute.xlu0 %1039
        %1049 = vrot.lane.b32.xlu0 %v1009, 48
        %v1050 = vpop.permute.xlu0 %1049
        %1051 = vrot.lane.b32.xlu0 %v1011, 48
        %v1052 = vpop.permute.xlu0 %1051
        %1053 = vrot.lane.b32.xlu0 %v1012, 48
        %v1054 = vpop.permute.xlu0 %1053
        %1055 = vrot.lane.b32.xlu0 %v1013, 48
        %v1056 = vpop.permute.xlu0 %1055
        %1057 = vrot.lane.b32.xlu0 %v1014, 48
        %v1058 = vpop.permute.xlu0 %1057
        %1059 = vrot.lane.b32.xlu0 %v1015, 48
        %v1060 = vpop.permute.xlu0 %1059
        %1061 = vrot.lane.b32.xlu0 %v1016, 48
        %v1062 = vpop.permute.xlu0 %1061
        %v1070 = vsel %vm630, %v1009, %v1026
        %v1071 = vsel %vm630, %v1010, %v1028
        %v1072 = vsel %vm630, %v1009, %v1030
        %v1073 = vsel %vm630, %v1011, %v1032
        %v1074 = vsel %vm630, %v1012, %v1034
        %v1075 = vsel %vm630, %v1013, %v1036
        %v1076 = vsel %vm630, %v1014, %v1038
        %v1077 = vsel %vm630, %v1015, %v1040
        %vm1078 = vcmask 392192
        %v1079 = vsel %vm1078, %v1070, %v1050
        %v1080 = vsel %vm1078, %v1071, %v1052
        %v1081 = vsel %vm1078, %v1072, %v1054
        %v1082 = vsel %vm1078, %v1073, %v1056
        %v1083 = vsel %vm1078, %v1074, %v1058
        %v1084 = vsel %vm1078, %v1075, %v1060
        %v1085 = vsel %vm1078, %v1076, %v1062
        %v1086 = vsel %vm1078, %v1077, %v1060
        %v1087 = vld [vmem:[%s4] sm:$0xff]
        %v1088 = vld [vmem:[%s4 + $0x8] sm:$0xff]
        %v1089 = vld [vmem:[%s4 + $0x10] sm:$0xff]
        %v1090 = vld [vmem:[%s4 + $0x18] sm:$0xff]
        %v1091 = vld [vmem:[%s4 + $0x20] sm:$0xff]
        %v1092 = vld [vmem:[%s4 + $0x28] sm:$0xff]
        %v1093 = vld [vmem:[%s4 + $0x30] sm:$0xff]
        %v1094 = vld [vmem:[%s4 + $0x38] sm:$0xff]
        %v1095 = vld [vmem:[%s4 + $0x40] sm:$0xff]
        %vm1096 = vcmask 588800
        %v1098 = vsel %vm1096, %v1079, 0
        %v1101 = vsel %vm1096, %v1080, 0
        %v1104 = vsel %vm1096, %v1081, 0
        %v1107 = vsel %vm1096, %v1082, 0
        %v1110 = vsel %vm1096, %v1083, 0
        %v1113 = vsel %vm1096, %v1084, 0
        %v1116 = vsel %vm1096, %v1085, 0
        %v1119 = vsel %vm1096, %v1086, 0
        %1121 = vmatprep.subr.mxu0 0.0
        %1122 = vmatpush1.msra.mxu0 %v1087
        %1123 = vmatprep.subr.mxu0 0.0
        %1124 = vmatpush1.msra.mxu0 %v1088
        %1125 = vmatprep.subr.mxu0 0.0
        %1126 = vmatpush1.msra.mxu0 %v1089
        %1127 = vmatprep.subr.mxu0 0.0
        %1128 = vmatpush1.msra.mxu0 %v1090
        %1129 = vmatprep.subr.mxu0 0.0
        %1130 = vmatpush1.msra.mxu0 %v1091
        %1131 = vmatprep.subr.mxu0 0.0
        %1132 = vmatpush1.msra.mxu0 %v1092
        %1133 = vmatprep.subr.mxu0 0.0
        %1134 = vmatpush1.msra.mxu0 %v1093
        %1135 = vmatprep.subr.mxu0 0.0
        %1136 = vmatpush1.msra.mxu0 %v1094
        %1137 = vmatprep.subr.mxu0 0.0
        %1138 = vmatpush1.msra.mxu0 %v1095
        %1139 = vmatprep.subr.mxu0 0.0
        %1140 = vmatpush1.msra.mxu0 0.0
        %1141 = vmatprep.subr.mxu0 0.0
        %1142 = vmatpush1.msra.mxu0 0.0
        %1143 = vmatprep.subr.mxu0 0.0
        %1144 = vmatpush1.msra.mxu0 0.0
        %1145 = vmatprep.subr.mxu0 0.0
        %1146 = vmatpush1.msra.mxu0 0.0
        %1147 = vmatprep.subr.mxu0 0.0
        %1148 = vmatpush1.msra.mxu0 0.0
        %1149 = vmatprep.subr.mxu0 0.0
        %1150 = vmatpush1.msra.mxu0 0.0
        %1151 = vmatprep.subr.mxu0 0.0
        %1152 = vmatpush1.msra.mxu0 0.0
        %1153 = vmatprep.subr.mxu0 0.0
        %1154 = vmatpush1.msra.mxu0 0.0
        %1155 = vmatprep.subr.mxu0 0.0
        %1156 = vmatpush1.msra.mxu0 0.0
        %1157 = vmatprep.subr.mxu0 0.0
        %1158 = vmatpush1.msra.mxu0 0.0
        %1159 = vmatprep.subr.mxu0 0.0
        %1160 = vmatpush1.msra.mxu0 0.0
        %1161 = vmatprep.subr.mxu0 0.0
        %1162 = vmatpush1.msra.mxu0 0.0
        %1163 = vmatprep.subr.mxu0 0.0
        %1164 = vmatpush1.msra.mxu0 0.0
        %1165 = vmatprep.subr.mxu0 0.0
        %1166 = vmatpush1.msra.mxu0 0.0
        %1167 = vmatprep.subr.mxu0 0.0
        %1168 = vmatpush1.msra.mxu0 0.0
        %1169 = vmatprep.subr.mxu0 0.0
        %1170 = vmatpush1.msra.mxu0 0.0
        %1171 = vmatprep.subr.mxu0 0.0
        %1172 = vmatpush1.msra.mxu0 0.0
        %1173 = vmatprep.subr.mxu0 0.0
        %1174 = vmatpush1.msra.mxu0 0.0
        %1175 = vmatprep.subr.mxu0 0.0
        %1176 = vmatpush1.msra.mxu0 0.0
        %1177 = vmatprep.subr.mxu0 0.0
        %1178 = vmatpush1.msra.mxu0 0.0
        %1179 = vmatprep.subr.mxu0 0.0
        %1180 = vmatpush1.msra.mxu0 0.0
        %1181 = vmatprep.subr.mxu0 0.0
        %1182 = vmatpush1.msra.mxu0 0.0
        %1183 = vmatprep.subr.mxu0 0.0
        %1184 = vmatpush1.msra.mxu0 0.0
        %1185 = vmatprep.mubr.f32.mxu0 0.0
        %1186 = vmatmul.mubr.f32.gmra.mrb[0].mxu0 %v1098
        %v1187 = vpop.f32.mrb[0].mxu0
        %v1188 = vadd.f32 0.0, %v1187
        %v1189 = vpop.f32.mrb[0].mxu0
        %1190 = vmatprep.mubr.f32.mxu0 0.0
        %1191 = vmatmul.mubr.f32.gmra.mrb[0].mxu0 %v1101
        %v1192 = vpop.f32.mrb[0].mxu0
        %v1193 = vadd.f32 0.0, %v1192
        %v1194 = vpop.f32.mrb[0].mxu0
        %1195 = vmatprep.mubr.f32.mxu0 0.0
        %1196 = vmatmul.mubr.f32.gmra.mrb[0].mxu0 %v1104
        %v1197 = vpop.f32.mrb[0].mxu0
        %v1198 = vadd.f32 0.0, %v1197
        %v1199 = vpop.f32.mrb[0].mxu0
        %1200 = vmatprep.mubr.f32.mxu0 0.0
        %1201 = vmatmul.mubr.f32.gmra.mrb[0].mxu0 %v1107
        %v1202 = vpop.f32.mrb[0].mxu0
        %v1203 = vadd.f32 0.0, %v1202
        %v1204 = vpop.f32.mrb[0].mxu0
        %1205 = vmatprep.mubr.f32.mxu0 0.0
        %1206 = vmatmul.mubr.f32.gmra.mrb[0].mxu0 %v1110
        %v1207 = vpop.f32.mrb[0].mxu0
        %v1208 = vadd.f32 0.0, %v1207
        %v1209 = vpop.f32.mrb[0].mxu0
        %1210 = vmatprep.mubr.f32.mxu0 0.0
        %1211 = vmatmul.mubr.f32.gmra.mrb[0].mxu0 %v1113
        %v1212 = vpop.f32.mrb[0].mxu0
        %v1213 = vadd.f32 0.0, %v1212
        %v1214 = vpop.f32.mrb[0].mxu0
        %1215 = vmatprep.mubr.f32.mxu0 0.0
        %1216 = vmatmul.mubr.f32.gmra.mrb[0].mxu0 %v1116
        %v1217 = vpop.f32.mrb[0].mxu0
        %v1218 = vadd.f32 0.0, %v1217
        %v1219 = vpop.f32.mrb[0].mxu0
        %1220 = vmatprep.mubr.f32.mxu0 0.0
        %1221 = vmatmul.mubr.f32.gmra.mrb[0].mxu0 %v1119
        %v1222 = vpop.f32.mrb[0].mxu0
        %v1223 = vadd.f32 0.0, %v1222
        %v1224 = vpop.f32.mrb[0].mxu0
        %1225 = vdwg.mxu0
        %v1226 = vld [vmem:[%s5] sm:$0x1]
        %v1228 = vlaneseq
        %v1229 = vshrl.u32 %v1228, 7
        %v1230 = vsub.s32 0, %v1229
        %v1231 = vrot.slane %v1226, %v1230
        %v1233 = vmul.f32 %v1188, %v1231
        %v1234 = vmul.f32 %v1193, %v1231
        %v1235 = vmul.f32 %v1198, %v1231
        %v1236 = vmul.f32 %v1203, %v1231
        %v1237 = vmul.f32 %v1208, %v1231
        %v1238 = vmul.f32 %v1213, %v1231
        %v1239 = vmul.f32 %v1218, %v1231
        %v1240 = vmul.f32 %v1223, %v1231
        %v1241 = vld [vmem:[%s6] sm:$0x1]
        %v1243 = vlaneseq
        %v1244 = vshrl.u32 %v1243, 7
        %v1245 = vsub.s32 0, %v1244
        %v1246 = vrot.slane %v1241, %v1245
        %v1248 = vadd.f32 %v1233, %v1246
        %v1249 = vadd.f32 %v1234, %v1246
        %v1250 = vadd.f32 %v1235, %v1246
        %v1251 = vadd.f32 %v1236, %v1246
        %v1252 = vadd.f32 %v1237, %v1246
        %v1253 = vadd.f32 %v1238, %v1246
        %v1254 = vadd.f32 %v1239, %v1246
        %v1255 = vadd.f32 %v1240, %v1246
        %v1256 = vmax.f32 %v1248, 0.0
        %v1257 = vmax.f32 %v1249, 0.0
        %v1258 = vmax.f32 %v1250, 0.0
        %v1259 = vmax.f32 %v1251, 0.0
        %v1260 = vmax.f32 %v1252, 0.0
        %v1261 = vmax.f32 %v1253, 0.0
        %v1262 = vmax.f32 %v1254, 0.0
        %v1263 = vmax.f32 %v1255, 0.0
        %1264 = vst.msk [vmem:[%s298] sm:$0xff] %vm559, %v1256
        %1265 = vst.msk [vmem:[%s298 + $0x8] sm:$0xff] %vm559, %v1257
        %1266 = vst.msk [vmem:[%s298 + $0x10] sm:$0xff] %vm559, %v1258
        %1267 = vst.msk [vmem:[%s298 + $0x18] sm:$0xff] %vm559, %v1259
        %1268 = vst.msk [vmem:[%s298 + $0x20] sm:$0xff] %vm559, %v1260
        %1269 = vst.msk [vmem:[%s298 + $0x28] sm:$0xff] %vm559, %v1261
        %1270 = vst.msk [vmem:[%s298 + $0x30] sm:$0xff] %vm559, %v1262
        %1271 = vst.msk [vmem:[%s298 + $0x38] sm:$0xff] %vm559, %v1263
        %p1272 = scmp.lt.s32.totalorder %s21, 1
        %s1273 = scalar_select %p1272, %s21, 1
        %s1274 = smul.addr %s1273, 8
        %s1275 = smul.addr %s1274, 8
        %s1276 = scalar_lea.vmem %s7, %s1275
        // Predicated region
        $region53: #{tpu_custom_call.1} parent=47 // pred_check
          %p1277 = pneg %p191
        $region54: #{tpu_custom_call.1} parent=47 // pred_check_branch
          %1279 = sbr.rel (%p1277) target = $region56
        $region55: #{tpu_custom_call.1} parent=47 // pred_region
          _
        $region56: #{tpu_custom_call.1} parent=47 // pred_fallthru
          _
      $region48: #{tpu_custom_call.1} parent=5 // pred_fallthru
        _
      %p1280 = scmp.le.s32.totalorder 2, %s16
      // Predicated region
      $region57: #{tpu_custom_call.1} parent=5 // pred_check
        %p1281 = pneg %p1280
      $region58: #{tpu_custom_call.1} parent=5 // pred_check_branch
        %1283 = sbr.rel (%p1281) target = $region60
      $region59: #{tpu_custom_call.1} parent=5 // pred_region
        %s1284 = ssub.s32 %s16, 2
        // Predicated region
        $region61: #{tpu_custom_call.1} parent=59 // pred_check
          %p1285 = pneg %p197
        $region62: #{tpu_custom_call.1} parent=59 // pred_check_branch
          %1287 = sbr.rel (%p1285) target = $region64
        $region63: #{tpu_custom_call.1} parent=59 // pred_region
          %p1288 = scmp.lt.s32.totalorder %s22, 1
          %s1289 = scalar_select %p1288, %s22, 1
          %s1290 = smul.addr %s1289, 8
          %s1291 = smul.addr %s1290, 8
          %s1292 = scalar_lea.vmem %s7, %s1291
        $region64: #{tpu_custom_call.1} parent=59 // pred_fallthru
          _
      $region60: #{tpu_custom_call.1} parent=5 // pred_fallthru
        _
    $region6: #{tpu_custom_call.1} parent=1 // loop_footer
      %s20 = sadd.s32 1, %s16
    $region7: #{tpu_custom_call.1} parent=1 // loop_footer_branch
      %15 = sbr.rel target = $region3
    $region8: #{tpu_custom_call.1} parent=1 // loop_exit
      _
    %1293 = vsyncpa [#allocation3], 1
    %s1294 = scalar_lea.sflag [#allocation3], 1
    %1295 = vsyncpa %s1294, 1

</llo_original>
